<compile_context>
chip_gen: v7x
topology: tpu7x:2x2x1
jax: 0.10.0
libtpu: 0.0.40
codegen_flags: <defaults>
</compile_context>

<pallas_src>
import functools

import jax
import jax.numpy as jnp
from jax.experimental import pallas as pl
from jax.experimental.pallas import tpu as pltpu


def _ce_label_smooth_kernel(logits_ref, target_ref, out_ref, *,
                            epsilon, batch, tb, mask_rows):
    pid = pl.program_id(0)

    x = logits_ref[...]                                   # (TB, C) input dtype
    tb_rows, c = x.shape
    xf = x.astype(jnp.float32)                            # cast on-chip

    # Numerically stable log-softmax pieces (log_probs never materialized).
    m = jnp.max(xf, axis=-1, keepdims=True)               # (TB, 1)
    s = xf - m                                            # (TB, C)
    lse = jnp.log(jnp.sum(jnp.exp(s), axis=-1, keepdims=True))   # (TB, 1)

    # Single fused weighted lane-reduction:
    #   (1-eps)*(s_tgt - lse) + eps*(sum_s/C - lse) == sum_c(w * s) - lse
    # with w = 1-eps+eps/C at the target class and eps/C elsewhere
    # (weights sum to 1, so exactly one lse subtraction remains).
    cls_ids = jax.lax.broadcasted_iota(jnp.int32, (tb_rows, c), 1)
    tgt = target_ref[...]                                 # (TB, 1) int32
    w_on = jnp.float32(1.0 - epsilon + epsilon / c)
    w_off = jnp.float32(epsilon / c)
    w = jnp.where(cls_ids == tgt, w_on, w_off)            # (TB, C)
    row_term = jnp.sum(w * s, axis=-1, keepdims=True) - lse      # (TB, 1)

    if mask_rows:
        # Only the (TB, 1) column is masked; garbage in padded rows of a
        # partial last tile stays confined to that row's keepdims values.
        row_ids = pid * tb + jax.lax.broadcasted_iota(jnp.int32, (tb_rows, 1), 0)
        row_term = jnp.where(row_ids < batch, row_term, 0.0)

    tile_sum = jnp.sum(row_term)                          # scalar f32
    # Per-tile partial written to this step's own lane-dense block; summed in
    # the wrapper. Keeps the grid axis "parallel" (no cross-step carry).
    out_ref[...] = jnp.broadcast_to(tile_sum, out_ref.shape)


def _vmem_config():
    """Generation-aware VMEM sizing (v5e/v6e: 128 MiB, v7x: 64 MiB per TC)."""
    cap = None
    try:
        cap = getattr(pltpu.get_tpu_info(), "vmem_capacity_bytes", None)
    except Exception:
        cap = None
    if not cap:
        cap = 64 * 1024 * 1024            # conservative: assume smallest (v7x)
    budget = cap // 3                     # tile-selection budget
    limit = (cap * 3) // 4                # scoped VMEM limit (headroom kept)
    return int(budget), int(limit)


def _choose_tb(b, c, itemsize, vmem_budget_bytes):
    """Largest batch tile whose double-buffered streamed block plus ~two f32
    working tiles fits the budget. Sublane-aligned to the streamed dtype
    (8 for 32-bit, 16 for bf16/fp16, 32 for 8-bit)."""
    mult = {1: 32, 2: 16}.get(itemsize, 8)
    if b <= mult:
        return b                          # full-dim block is always legal
    per_row = c * (2 * itemsize + 8)      # 2x streamed buffer + 2 f32 temps
    for tb in (4096, 2048, 1024, 512, 256, 128, 64, 32, 16, 8):
        if tb % mult or tb > b:
            continue
        if tb * per_row <= vmem_budget_bytes:
            return tb
    if mult * per_row > vmem_budget_bytes:
        # TODO(synk): class-axis tiling (online logsumexp over C-chunks) for
        # very large vocabularies; until then fail loudly rather than spill.
        raise ValueError(
            f"CrossEntropyLabelSmooth kernel: a single ({mult}, {c}) block "
            f"does not fit the VMEM budget ({vmem_budget_bytes} bytes); "
            "class-axis tiling is required for this problem size.")
    return mult


def cross_entropy_label_smooth(logits, target, epsilon, *, tb=None):
    """logits: (B, C) float; target: (B,) int labels. Returns scalar f32 loss."""
    b, c = logits.shape
    itemsize = jnp.dtype(logits.dtype).itemsize
    target2d = target.astype(jnp.int32).reshape(b, 1)

    vmem_budget, vmem_limit = _vmem_config()
    if tb is None:
        tb = _choose_tb(b, c, itemsize, vmem_budget)
    grid = pl.cdiv(b, tb)

    cost = pl.CostEstimate(
        flops=7 * b * c,                  # sub/compare/select/mul/sum passes
        transcendentals=b * c + b,        # exp per logit + log per row
        bytes_accessed=b * c * itemsize + b * 4 + grid * 8 * 128 * 4,
    )

    kernel = functools.partial(
        _ce_label_smooth_kernel, epsilon=float(epsilon), batch=b, tb=tb,
        mask_rows=(b % tb != 0))

    partials = pl.pallas_call(
        kernel,
        out_shape=jax.ShapeDtypeStruct((grid, 8, 128), jnp.float32),
        grid_spec=pltpu.PrefetchScalarGridSpec(
            num_scalar_prefetch=0,
            grid=(grid,),
            in_specs=[
                pl.BlockSpec((tb, c), lambda i: (i, 0)),   # logits batch tile
                pl.BlockSpec((tb, 1), lambda i: (i, 0)),   # matching targets
            ],
            # Each step owns one (1, 8, 128)-aligned partial block.
            out_specs=pl.BlockSpec((1, 8, 128), lambda i: (i, 0, 0)),
        ),
        compiler_params=pltpu.CompilerParams(
            dimension_semantics=("parallel",),   # independent tiles (megacore)
            vmem_limit_bytes=vmem_limit,
        ),
        cost_estimate=cost,
    )(logits, target2d)

    # loss = -(smoothed * log_probs).mean(0).sum() == -(sum of row terms) / B
    return -(jnp.sum(partials[:, 0, 0]) / jnp.float32(b))


def _reference(logits, target, epsilon):
    # Pure-JAX reference of the PyTorch module.
    c = logits.shape[-1]
    log_probs = jax.nn.log_softmax(logits.astype(jnp.float32), axis=1)
    one_hot = jax.nn.one_hot(target, c, dtype=jnp.float32)
    smoothed = (1.0 - epsilon) * one_hot + epsilon / c
    return -(smoothed * log_probs).mean(0).sum()


if __name__ == "__main__":
    key = jax.random.PRNGKey(0)
    k1, k2, k3, k4, k5, k6 = jax.random.split(key, 6)

    # Case 1: tiny batch, single tile (grid = 1).
    b1, c1, eps1 = 8, 32, 0.1
    logits1 = jax.random.normal(k1, (b1, c1), dtype=jnp.float32)
    target1 = jax.random.randint(k2, (b1,), 0, c1, dtype=jnp.int32)
    loss1 = cross_entropy_label_smooth(logits1, target1, eps1)
    jax.block_until_ready(loss1)
    ref1 = _reference(logits1, target1, eps1)
    assert jnp.allclose(loss1, ref1, atol=1e-5, rtol=1e-5), (loss1, ref1)

    # Case 2: batch not a multiple of the tile -> multi-step parallel grid
    # with a partial (masked) last tile and a wrapper-side partial sum.
    b2, c2, eps2 = 20, 32, 0.2
    logits2 = jax.random.normal(k3, (b2, c2), dtype=jnp.float32)
    target2 = jax.random.randint(k4, (b2,), 0, c2, dtype=jnp.int32)
    loss2 = cross_entropy_label_smooth(logits2, target2, eps2, tb=8)
    jax.block_until_ready(loss2)
    ref2 = _reference(logits2, target2, eps2)
    assert jnp.allclose(loss2, ref2, atol=1e-5, rtol=1e-5), (loss2, ref2)

    # Case 3: bf16 input exercising the 16-row sublane alignment path
    # (tb=32, grid=2, partial last tile) with on-chip f32 math.
    b3, c3, eps3 = 48, 128, 0.1
    logits3 = jax.random.normal(k5, (b3, c3), dtype=jnp.bfloat16)
    target3 = jax.random.randint(k6, (b3,), 0, c3, dtype=jnp.int32)
    loss3 = cross_entropy_label_smooth(logits3, target3, eps3)
    jax.block_until_ready(loss3)
    ref3 = _reference(logits3, target3, eps3)
    assert jnp.allclose(loss3, ref3, atol=1e-4, rtol=1e-4), (loss3, ref3)

    print("KERNEL_OK")
</pallas_src>

<mosaic_0001>
module attributes {stable_mosaic.version = 11 : i64} {
  func.func @_ce_label_smooth_kernel(%arg0: i32, %arg1: memref<8x32xf32, #tpu.memory_space<vmem>>, %arg2: memref<8x1xi32, #tpu.memory_space<vmem>>, %arg3: memref<1x8x128xf32, #tpu.memory_space<vmem>>) attributes {dimension_semantics = [#tpu.dimension_semantics<parallel>], iteration_bounds = array<i64: 1>, scalar_prefetch = 0 : i64, scratch_operands = 0 : i64, tpu.core_type = #tpu.core_type<tc>, window_params = [{transform_indices = @transform_0, window_bounds = array<i64: 8, 32>}, {transform_indices = @transform_1, window_bounds = array<i64: 8, 1>}, {transform_indices = @transform_2, window_bounds = array<i64: 1, 8, 128>}]} {
    %c0 = arith.constant 0 : index
    %c0_0 = arith.constant 0 : index
    %0 = vector.load %arg1[%c0, %c0_0] : memref<8x32xf32, #tpu.memory_space<vmem>>, vector<8x32xf32>
    %cst = arith.constant dense<0xFF800000> : vector<8xf32>
    %1 = vector.multi_reduction <maximumf>, %0, %cst [1] : vector<8x32xf32> to vector<8xf32>
    %2 = vector.shape_cast %1 : vector<8xf32> to vector<8x1xf32>
    %3 = vector.broadcast %2 : vector<8x1xf32> to vector<8x32xf32>
    %4 = arith.subf %0, %3 : vector<8x32xf32>
    %5 = math.exp %4 : vector<8x32xf32>
    %cst_1 = arith.constant dense<0.000000e+00> : vector<8xf32>
    %6 = vector.multi_reduction <add>, %5, %cst_1 [1] : vector<8x32xf32> to vector<8xf32>
    %7 = vector.shape_cast %6 : vector<8xf32> to vector<8x1xf32>
    %8 = math.log %7 : vector<8x1xf32>
    %9 = tpu.iota {dimensions = array<i32: 1>} : vector<8x32xi32>
    %c0_2 = arith.constant 0 : index
    %c0_3 = arith.constant 0 : index
    %10 = vector.load %arg2[%c0_2, %c0_3] : memref<8x1xi32, #tpu.memory_space<vmem>>, vector<8x1xi32>
    %11 = vector.broadcast %10 : vector<8x1xi32> to vector<8x32xi32>
    %12 = arith.cmpi eq, %9, %11 : vector<8x32xi32>
    %cst_4 = arith.constant 0.903124988 : f32
    %cst_5 = arith.constant 3.125000e-03 : f32
    %13 = vector.broadcast %cst_4 : f32 to vector<8x32xf32>
    %14 = vector.broadcast %cst_5 : f32 to vector<8x32xf32>
    %15 = arith.select %12, %13, %14 : vector<8x32xi1>, vector<8x32xf32>
    %16 = arith.mulf %15, %4 : vector<8x32xf32>
    %cst_6 = arith.constant dense<0.000000e+00> : vector<8xf32>
    %17 = vector.multi_reduction <add>, %16, %cst_6 [1] : vector<8x32xf32> to vector<8xf32>
    %18 = vector.shape_cast %17 : vector<8xf32> to vector<8x1xf32>
    %19 = arith.subf %18, %8 : vector<8x1xf32>
    %20 = vector.shape_cast %19 : vector<8x1xf32> to vector<1x8x1xf32>
    %cst_7 = arith.constant dense<0.000000e+00> : vector<1xf32>
    %21 = vector.multi_reduction <add>, %20, %cst_7 [1, 2] : vector<1x8x1xf32> to vector<1xf32>
    %22 = vector.shape_cast %21 : vector<1xf32> to vector<1x1x1xf32>
    %23 = vector.extract %22[0, 0, 0] : f32 from vector<1x1x1xf32>
    %24 = vector.broadcast %23 : f32 to vector<1x8x128xf32>
    %c0_8 = arith.constant 0 : index
    %c0_9 = arith.constant 0 : index
    %c0_10 = arith.constant 0 : index
    %25 = vector.load %arg3[%c0_8, %c0_9, %c0_10] : memref<1x8x128xf32, #tpu.memory_space<vmem>>, vector<1x8x128xf32>
    tpu.vector_store %arg3[%c0_8, %c0_9, %c0_10], %24 {strides = array<i32>} : memref<1x8x128xf32, #tpu.memory_space<vmem>>, vector<1x8x128xf32>,
    return
  }
  func.func @transform_0(%arg0: i32) -> (i32, i32) {
    %c0_i32 = arith.constant 0 : i32
    %c0_i32_0 = arith.constant 0 : i32
    return %arg0, %c0_i32 : i32, i32
  }
  func.func @transform_1(%arg0: i32) -> (i32, i32) {
    %c0_i32 = arith.constant 0 : i32
    %c0_i32_0 = arith.constant 0 : i32
    return %arg0, %c0_i32 : i32, i32
  }
  func.func @transform_2(%arg0: i32) -> (i32, i32, i32) {
    %c0_i32 = arith.constant 0 : i32
    %c0_i32_0 = arith.constant 0 : i32
    %c0_i32_1 = arith.constant 0 : i32
    return %arg0, %c0_i32, %c0_i32_0 : i32, i32, i32
  }
}

</mosaic_0001>

<llo_original>
// kernel: tpu_custom_call.1
$region0: #{tpu_custom_call.1}
  #allocation0 [shape = 'u32[]', space=smem, size = 0x4, offset = 0x4, fixed_abs, tag = 'smem constant byte address 0x4 - core index']
  #allocation1 [shape = 'u32[144,128]{1,0:T(1,128)}', space=vmem, size = 0x12000, scoped, tag = 'internal scratch']
  %s0 = inlined_call_operand.vmem [shape: f32[8,32], index: 0, kind: input, shape index: {}]
  %s1 = inlined_call_operand.vmem [shape: s32[8,1], index: 1, kind: input, shape index: {}]
  %s2 = inlined_call_operand.hbm [shape: f32[1,8,128], index: 2, kind: output, shape index: {}]
  %s3 = sld [smem:[#allocation0]]
  $region18: #{tpu_custom_call.1} parent=0
    _
  %s5 = ssub.s32 1, %s3
  %s6 = scalar_select 0, %s5, %s3
  $region1: #{tpu_custom_call.1} parent=0
    #allocation2 [shape = 'u8[4096]{0}', space=vmem, size = 0x1000, scoped, tag = 'output window, operand 0, single buffered']
    #allocation3 [shape = 's32[1]{0}', space=sflag, size = 0x4, scoped, tag = 'scoped memory for tpu_custom_call.1']
    %7 = vsyncpa [#allocation3], 0
    // Predicated region
    $region2: #{tpu_custom_call.1} parent=1 // pred_check
      _
    $region3: #{tpu_custom_call.1} parent=1 // pred_check_branch
      %9 = sbr.rel (0) target = $region5
    $region4: #{tpu_custom_call.1} parent=1 // pred_region
      _
    $region5: #{tpu_custom_call.1} parent=1 // pred_fallthru
      _
    // Predicated region
    $region6: #{tpu_custom_call.1} parent=1 // pred_check
      _
    $region7: #{tpu_custom_call.1} parent=1 // pred_check_branch
      %11 = sbr.rel (0) target = $region9
    $region8: #{tpu_custom_call.1} parent=1 // pred_region
      _
    $region9: #{tpu_custom_call.1} parent=1 // pred_fallthru
      _
    %v12 = vld [vmem:[%s0] sm:$0xff]
    %vm13 = vcmask 261120
    %v14 = vsel %vm13, %v12, -inf
    %15 = vmax.xlane.f32.xlu0 %v14
    %v16 = vpop.xlane.xlu0 %15
    %v17 = vsub.f32 %v12, %v16
    %v18 = vmul.f32 %v17, 1.442695
    %v19 = vpow.pop %v18
    %v20 = vsel %vm13, %v19, 0.0
    %21 = vadd.xlane.f32.xlu0 %v20
    %v22 = vpop.xlane.xlu0 %21
    %v23 = vlog2.pop %v22
    %v24 = vmul.f32 %v23, 0.6931472
    %v25 = vlaneseq
    %v26 = vand.u32 %v25, 127
    %v27 = vld [vmem:[%s1] sm:$0xff]
    %28 = vset.pattern.permute.xlu0 0
    %29 = vperm.xlu0 %28, %v27
    %v30 = vpop.permute.xlu0 %29
    %vm31 = vcmp.eq.s32.totalorder %v26, %v30
    %v32 = vsel %vm31, 0.903125, 0.003125
    %v33 = vmul.f32 %v32, %v17
    %v34 = vsel %vm13, %v33, 0.0
    %35 = vadd.xlane.f32.xlu0 %v34
    %v36 = vpop.xlane.xlu0 %35
    %v37 = vsub.f32 %v36, %v24
    %vm38 = vcmask 7168
    %v39 = vsel %vm38, %v37, 0.0
    %40 = vadd.xlane.f32.xlu0 %v39
    %v41 = vpop.xlane.xlu0 %40
    %v42 = vrot.slane %v41, 4
    %v43 = vadd.f32 %v41, %v42
    %v44 = vrot.slane %v43, 2
    %v45 = vadd.f32 %v43, %v44
    %v46 = vrot.slane %v45, 1
    %v47 = vadd.f32 %v45, %v46
    %s48 = vtos %v47
    %v49 = vstv %s48
    %50 = vst [vmem:[#allocation2] sm:$0xff] %v49
    // Predicated region
    $region10: #{tpu_custom_call.1} parent=1 // pred_check
      _
    $region11: #{tpu_custom_call.1} parent=1 // pred_check_branch
      %52 = sbr.rel (0) target = $region13
    $region12: #{tpu_custom_call.1} parent=1 // pred_region
      %s54 = ssub.s32 128, 128
      %55 = vsyncadd [#allocation3], %s54
      %s57 = sshll.u32 [#allocation2], 4
      %s58 = int_to_ptr.vmem [resolvable:$true] %s57
      %60 = dma.vmem_to_hbm [thread:$0]  %s58, 128, %s2, [#allocation3]
    $region13: #{tpu_custom_call.1} parent=1 // pred_fallthru
      _
    // Predicated region
    $region14: #{tpu_custom_call.1} parent=1 // pred_check
      _
    $region15: #{tpu_custom_call.1} parent=1 // pred_check_branch
      %62 = sbr.rel (0) target = $region17
    $region16: #{tpu_custom_call.1} parent=1 // pred_region
      %63 = dma.done [#allocation3], 128
    $region17: #{tpu_custom_call.1} parent=1 // pred_fallthru
      _
    %64 = vsyncpa [#allocation3], 1

</llo_original>
